<compile_context>
chip_gen: v7x
topology: tpu7x:2x2x1
jax: 0.10.0
libtpu: 0.0.40
codegen_flags: <defaults>
</compile_context>

<pallas_src>
import functools

import jax
import jax.numpy as jnp
from jax.experimental import pallas as pl
from jax.experimental.pallas import tpu as pltpu

KSIZE = 4
STRIDE = 2
PAD = 1
EPS = 1e-5            # nn.InstanceNorm2d default
LANES = 128
SUBLANE_ALIGN = 16    # bf16 packs 2 rows / sublane -> 16-row granule per vreg


def _round_up(v, m):
    return (v + m - 1) // m * m


def _pick_tile_h(h_out, w_row, max_rows=1024):
    """Largest divisor of h_out with tile_h * w_row <= max_rows (MXU M-tile sweet spot).

    Falls back to tile_h=1 when a single padded output row already exceeds the cap
    (the VMEM budget below accounts for whatever M results).
    """
    best = 1
    for th in range(1, h_out + 1):
        if h_out % th == 0 and th * w_row <= max_rows:
            best = th
    return best


def _encoder_block_kernel(x_ref, w_ref, b_ref, out_ref,
                          patch_ref, sum_ref, ssq_ref, mu_ref, istd_ref,
                          *, downsample, tile_h, w_out_p, k_half, n_pix):
    """One grid step = (batch b, pass p, row-tile t).

    x_ref     : (1, (H_out+1)*W_out_p, 8*C_in) bf16   row-pair slab, VMEM-resident per batch
    w_ref     : (16*C_in, C_p) bf16                   full im2col weight slab, (kh,kw,c) row order
    b_ref     : (1, C_p) f32                          conv bias (used only when downsample=False)
    out_ref   : (1, M, C_p)                            M = tile_h * W_out_p
    patch_ref : (M, 16*C_in) bf16 VMEM scratch        assembled patch tile
    sum/ssq   : (1, C_p) f32 scratch                   per-channel running sum / sum-of-squares
    mu/istd   : (1, C_p) f32 scratch                   finalized mean / inv_std (pass 1)
    """
    p = pl.program_id(1)
    t = pl.program_id(2)
    m = tile_h * w_out_p

    # ---- assemble the (M, 16*C_in) patch from two contiguous, 16-aligned row-pair slices:
    # low slice = kernel rows {0,1}, high slice = kernel rows {2,3} (offset by one row-pair).
    start0 = pl.multiple_of(t * (tile_h * w_out_p), SUBLANE_ALIGN)
    start1 = pl.multiple_of(start0 + w_out_p, SUBLANE_ALIGN)
    patch_ref[:, :k_half] = x_ref[0, pl.ds(start0, m), :]
    patch_ref[:, k_half:] = x_ref[0, pl.ds(start1, m), :]

    # ---- single MXU matmul, K = 16*C_in, bf16 inputs, f32 accumulation.
    y = jnp.dot(patch_ref[...], w_ref[...], preferred_element_type=jnp.float32)  # (M, C_p) f32

    if not downsample:
        # Conv2d only: add bias, no norm / ReLU.
        out_ref[0] = (y + b_ref[...]).astype(out_ref.dtype)
        return

    # Bias is intentionally NOT added on this path: InstanceNorm (affine=False) subtracts the
    # per-channel mean, so a per-channel bias cancels exactly.  Padded W_out columns therefore
    # contribute exactly 0 to the statistics below.

    @pl.when((p == 0) & (t == 0))
    def _init_stats():
        sum_ref[...] = jnp.zeros_like(sum_ref)
        ssq_ref[...] = jnp.zeros_like(ssq_ref)

    @pl.when(p == 0)
    def _accumulate_stats():
        sum_ref[...] += jnp.sum(y, axis=0, keepdims=True)
        ssq_ref[...] += jnp.sum(y * y, axis=0, keepdims=True)

    @pl.when((p == 1) & (t == 0))
    def _finalize_stats():
        inv_n = 1.0 / float(n_pix)
        mean = sum_ref[...] * inv_n
        var = ssq_ref[...] * inv_n - mean * mean          # biased variance, f32 accumulation
        mu_ref[...] = mean
        istd_ref[...] = jax.lax.rsqrt(jnp.maximum(var, 0.0) + EPS)

    @pl.when(p == 1)
    def _normalize_and_store():
        yn = (y - mu_ref[...]) * istd_ref[...]
        out_ref[0] = jnp.maximum(yn, 0.0).astype(out_ref.dtype)


def encoder_block(x, weight, bias, downsample=True, tile_h=None,
                  out_dtype=jnp.float32, channels_last=False):
    """x: (N, C_in, H, W) f32.  weight: (C_out, C_in, 4, 4).  bias: (C_out,).

    Returns NCHW f32 by default (PyTorch-module parity); pass out_dtype=jnp.bfloat16 and
    channels_last=True inside a multi-layer encoder to halve output writes and skip the
    NCHW transpose.
    """
    n, c_in, h, w = x.shape
    c_out = weight.shape[0]
    assert weight.shape == (c_out, c_in, KSIZE, KSIZE)
    assert h % 2 == 0 and w % 2 == 0, "stride-2 encoder expects even spatial dims"
    h_out = (h + 2 * PAD - KSIZE) // STRIDE + 1          # = H // 2
    w_out = (w + 2 * PAD - KSIZE) // STRIDE + 1          # = W // 2
    hw = h_out * w_out                                   # true pixel count for the mean
    c_p = _round_up(max(c_out, LANES), LANES)            # lane-dense output channels (do NOT
                                                         # chase 256: extra zero writes cost more)
    k_half = 8 * c_in                                    # lanes per row-pair (r, kw, c)
    k_full = 16 * c_in                                   # full im2col contraction depth

    # bf16 slab => dynamic sublane slice starts must be multiples of 16; every start is a
    # multiple of w_out_p, so pad the output width up to a 16 multiple (zeros, sliced off later).
    w_out_p = _round_up(w_out, SUBLANE_ALIGN)

    if tile_h is None:
        tile_h = _pick_tile_h(h_out, w_out_p)
    assert h_out % tile_h == 0, "tile_h must divide H_out"
    n_t = h_out // tile_h
    m = tile_h * w_out_p
    n_pass = 2 if downsample else 1
    s_rows = (h_out + 1) * w_out_p                       # slab sublane extent (row-pairs x cols)

    # ---- input prep (cheap XLA ops): pad -> NHWC -> unroll the 4 kw taps onto lanes ->
    # pad W_out -> group padded rows into row-pairs so each kernel-row pair is one lane block.
    xp = jnp.pad(x, ((0, 0), (0, 0), (PAD, PAD), (PAD, PAD)))          # (N, C, H+2, W+2)
    xp = xp.transpose(0, 2, 3, 1)                                      # (N, H+2, W+2, C)
    cols = [xp[:, :, kw:kw + STRIDE * w_out:STRIDE, :] for kw in range(KSIZE)]
    xw = jnp.stack(cols, axis=3)                                       # (N, H+2, W_out, 4, C)
    xw = xw.reshape(n, h + 2, w_out, KSIZE * c_in)                     # lane order (kw, c)
    xw = jnp.pad(xw, ((0, 0), (0, 0), (0, w_out_p - w_out), (0, 0)))   # zero-padded out columns
    xw = xw.reshape(n, h_out + 1, 2, w_out_p, KSIZE * c_in)            # row-pairs (2j, 2j+1)
    xw = xw.transpose(0, 1, 3, 2, 4)                                   # (N, H_out+1, W_out_p, 2, 4C)
    slab = xw.reshape(n, s_rows, k_half).astype(jnp.bfloat16)          # lane order (r, kw, c)

    # ---- weights: (C_out, C_in, kh, kw) -> (16*C_in, C_p), row order (kh, kw, c), bf16.
    wk = weight.transpose(2, 3, 1, 0).reshape(k_full, c_out)
    wk = jnp.pad(wk, ((0, 0), (0, c_p - c_out))).astype(jnp.bfloat16)
    b2 = jnp.pad(bias, (0, c_p - c_out)).reshape(1, c_p).astype(jnp.float32)

    # ---- VMEM budgeting (explicit): slab + weights + bias + out blocks + patch + stats.
    slab_bytes = s_rows * k_half * 2
    slab_single = 2 * slab_bytes > (16 << 20)            # drop pipeline buffer only when large
    w_bytes = k_full * c_p * 2
    w_single = 2 * w_bytes > (2 << 20)
    out_bytes = m * c_p * jnp.dtype(out_dtype).itemsize
    need = (slab_bytes * (1 if slab_single else 2)
            + w_bytes * (1 if w_single else 2)
            + 2 * c_p * 4                                # bias (double-buffered, tiny)
            + 2 * out_bytes                              # output block, double-buffered
            + m * k_full * 2                             # patch scratch
            + 4 * c_p * 4)                               # sum/ssq/mu/istd
    vmem_limit = int(min(max(need + (8 << 20), 32 << 20), 64 << 20))   # stay under v7x physical

    slab_kw = {"pipeline_mode": pl.Buffered(1)} if slab_single else {}
    w_kw = {"pipeline_mode": pl.Buffered(1)} if w_single else {}

    kernel = functools.partial(_encoder_block_kernel, downsample=downsample,
                               tile_h=tile_h, w_out_p=w_out_p, k_half=k_half, n_pix=hw)

    if downsample:
        # Pass 0 parks the output buffer on block (b,0,0) (no writes); pass 1 writes every tile.
        out_index = lambda b, p, t: (b, p * t, 0)
    else:
        out_index = lambda b, p, t: (b, t, 0)

    out = pl.pallas_call(
        kernel,
        out_shape=jax.ShapeDtypeStruct((n, h_out * w_out_p, c_p), out_dtype),
        grid_spec=pltpu.PrefetchScalarGridSpec(
            num_scalar_prefetch=0,
            grid=(n, n_pass, n_t),
            in_specs=[
                # Full per-batch slab; re-DMA'd only when b changes, so the two-pass
                # InstanceNorm costs no extra HBM reads (only cheap MXU recompute).
                pl.BlockSpec((1, s_rows, k_half), lambda b, p, t: (b, 0, 0), **slab_kw),
                pl.BlockSpec((k_full, c_p), lambda b, p, t: (0, 0), **w_kw),
                pl.BlockSpec((1, c_p), lambda b, p, t: (0, 0)),
            ],
            out_specs=pl.BlockSpec((1, m, c_p), out_index),
            scratch_shapes=[pltpu.VMEM((m, k_full), jnp.bfloat16),   # patch tile
                            pltpu.VMEM((1, c_p), jnp.float32),       # sum
                            pltpu.VMEM((1, c_p), jnp.float32),       # sum of squares
                            pltpu.VMEM((1, c_p), jnp.float32),       # mean
                            pltpu.VMEM((1, c_p), jnp.float32)],      # inv_std
        ),
        compiler_params=pltpu.CompilerParams(
            dimension_semantics=("parallel", "arbitrary", "arbitrary"),
            vmem_limit_bytes=vmem_limit),
    )(slab, wk, b2)

    out = out.reshape(n, h_out, w_out_p, c_p)[:, :, :w_out, :c_out]
    if channels_last:
        return out
    # NCHW for parity with the PyTorch module; keep channels-last downstream to skip this pass.
    return out.transpose(0, 3, 1, 2)


def _reference(x, weight, bias, downsample):
    y = jax.lax.conv_general_dilated(
        x, weight, window_strides=(STRIDE, STRIDE), padding=((PAD, PAD), (PAD, PAD)),
        dimension_numbers=("NCHW", "OIHW", "NCHW"),
        precision=jax.lax.Precision.HIGHEST)
    y = y + bias.reshape(1, -1, 1, 1)
    if downsample:
        mean = y.mean(axis=(2, 3), keepdims=True)
        var = ((y - mean) ** 2).mean(axis=(2, 3), keepdims=True)
        y = (y - mean) * jax.lax.rsqrt(var + EPS)
        y = jnp.maximum(y, 0.0)
    return y


if __name__ == "__main__":
    N, C_IN, C_OUT, H, W = 2, 4, 8, 16, 16

    key = jax.random.PRNGKey(0)
    kx, kwt, kb = jax.random.split(key, 3)
    x = jax.random.normal(kx, (N, C_IN, H, W), dtype=jnp.float32)
    weight = jax.random.normal(kwt, (C_OUT, C_IN, KSIZE, KSIZE), dtype=jnp.float32) * 0.1
    bias = jax.random.normal(kb, (C_OUT,), dtype=jnp.float32) * 0.1

    run = jax.jit(encoder_block, static_argnames=("downsample", "tile_h", "out_dtype",
                                                  "channels_last"))

    # downsample=True: conv -> InstanceNorm -> ReLU
    y = run(x, weight, bias, downsample=True)
    jax.block_until_ready(y)
    assert y.shape == (N, C_OUT, H // 2, W // 2), y.shape
    err = float(jnp.max(jnp.abs(y - _reference(x, weight, bias, True))))
    assert err < 5e-2, f"downsample=True mismatch: {err}"

    # downsample=False: conv (+bias) only
    y2 = run(x, weight, bias, downsample=False)
    jax.block_until_ready(y2)
    assert y2.shape == (N, C_OUT, H // 2, W // 2), y2.shape
    err2 = float(jnp.max(jnp.abs(y2 - _reference(x, weight, bias, False))))
    assert err2 < 5e-2, f"downsample=False mismatch: {err2}"

    print("KERNEL_OK")
</pallas_src>

<mosaic_0001>
module attributes {stable_mosaic.version = 11 : i64} {
  func.func @_encoder_block_kernel(%arg0: i32, %arg1: i32, %arg2: i32, %arg3: memref<1x144x32xbf16, #tpu.memory_space<vmem>>, %arg4: memref<64x128xbf16, #tpu.memory_space<vmem>>, %arg5: memref<1x128xf32, #tpu.memory_space<vmem>>, %arg6: memref<1x128x128xf32, #tpu.memory_space<vmem>>, %arg7: memref<128x64xbf16, #tpu.memory_space<vmem>>, %arg8: memref<1x128xf32, #tpu.memory_space<vmem>>, %arg9: memref<1x128xf32, #tpu.memory_space<vmem>>, %arg10: memref<1x128xf32, #tpu.memory_space<vmem>>, %arg11: memref<1x128xf32, #tpu.memory_space<vmem>>) attributes {dimension_semantics = [#tpu.dimension_semantics<parallel>, #tpu.dimension_semantics<arbitrary>, #tpu.dimension_semantics<arbitrary>], iteration_bounds = array<i64: 2, 2, 1>, scalar_prefetch = 0 : i64, scratch_operands = 5 : i64, tpu.core_type = #tpu.core_type<tc>, window_params = [{transform_indices = @transform_0, window_bounds = array<i64: 1, 144, 32>}, {pipeline_mode = #tpu.pipeline_mode<synchronous>, transform_indices = @transform_1, window_bounds = array<i64: 64, 128>}, {pipeline_mode = #tpu.pipeline_mode<synchronous>, transform_indices = @transform_2, window_bounds = array<i64: 1, 128>}, {transform_indices = @transform_3, window_bounds = array<i64: 1, 128, 128>}]} {
    %c128_i32 = arith.constant 128 : i32
    %0 = arith.muli %arg2, %c128_i32 : i32
    %1 = tpu.assume_multiple %0, 16 : i32
    %c16_i32 = arith.constant 16 : i32
    %2 = arith.addi %1, %c16_i32 : i32
    %3 = tpu.assume_multiple %2, 16 : i32
    %c0 = arith.constant 0 : index
    %4 = arith.index_cast %1 : i32 to index
    %c0_0 = arith.constant 0 : index
    %5 = vector.load %arg3[%c0, %4, %c0_0] : memref<1x144x32xbf16, #tpu.memory_space<vmem>>, vector<1x128x32xbf16>
    %6 = vector.shape_cast %5 : vector<1x128x32xbf16> to vector<128x32xbf16>
    %c0_1 = arith.constant 0 : index
    %c0_2 = arith.constant 0 : index
    %7 = vector.load %arg7[%c0_1, %c0_2] : memref<128x64xbf16, #tpu.memory_space<vmem>>, vector<128x32xbf16>
    tpu.vector_store %arg7[%c0_1, %c0_2], %6 {strides = array<i32>} : memref<128x64xbf16, #tpu.memory_space<vmem>>, vector<128x32xbf16>,
    %c0_3 = arith.constant 0 : index
    %8 = arith.index_cast %3 : i32 to index
    %c0_4 = arith.constant 0 : index
    %9 = vector.load %arg3[%c0_3, %8, %c0_4] : memref<1x144x32xbf16, #tpu.memory_space<vmem>>, vector<1x128x32xbf16>
    %10 = vector.shape_cast %9 : vector<1x128x32xbf16> to vector<128x32xbf16>
    %c0_5 = arith.constant 0 : index
    %c32 = arith.constant 32 : index
    %11 = vector.load %arg7[%c0_5, %c32] : memref<128x64xbf16, #tpu.memory_space<vmem>>, vector<128x32xbf16>
    tpu.vector_store %arg7[%c0_5, %c32], %10 {strides = array<i32>} : memref<128x64xbf16, #tpu.memory_space<vmem>>, vector<128x32xbf16>,
    %c0_6 = arith.constant 0 : index
    %c0_7 = arith.constant 0 : index
    %12 = vector.load %arg7[%c0_6, %c0_7] : memref<128x64xbf16, #tpu.memory_space<vmem>>, vector<128x64xbf16>
    %c0_8 = arith.constant 0 : index
    %c0_9 = arith.constant 0 : index
    %13 = vector.load %arg4[%c0_8, %c0_9] : memref<64x128xbf16, #tpu.memory_space<vmem>>, vector<64x128xbf16>
    %cst = arith.constant dense<0.000000e+00> : vector<128x128xf32>
    %14 = tpu.matmul %12, %13, %cst {dimension_numbers = #tpu.dot_dimension_numbers<[1], [0], [0], [1], [0, 0, 1, 1], [], []>} : vector<128x64xbf16>, vector<64x128xbf16>, vector<128x128xf32> -> vector<128x128xf32>
    %c0_i32 = arith.constant 0 : i32
    %15 = arith.cmpi eq, %arg1, %c0_i32 : i32
    %c0_i32_10 = arith.constant 0 : i32
    %16 = arith.cmpi eq, %arg2, %c0_i32_10 : i32
    %17 = arith.andi %15, %16 : i1
    %18 = arith.extui %17 : i1 to i32
    %c0_i32_11 = arith.constant 0 : i32
    %19 = arith.cmpi ne, %18, %c0_i32_11 : i32
    scf.if %19 {
      %cst_18 = arith.constant 0.000000e+00 : f32
      %31 = vector.broadcast %cst_18 : f32 to vector<1x128xf32>
      %c0_19 = arith.constant 0 : index
      %c0_20 = arith.constant 0 : index
      %32 = vector.load %arg8[%c0_19, %c0_20] : memref<1x128xf32, #tpu.memory_space<vmem>>, vector<1x128xf32>
      tpu.vector_store %arg8[%c0_19, %c0_20], %31 {strides = array<i32>} : memref<1x128xf32, #tpu.memory_space<vmem>>, vector<1x128xf32>,
      %cst_21 = arith.constant 0.000000e+00 : f32
      %33 = vector.broadcast %cst_21 : f32 to vector<1x128xf32>
      %c0_22 = arith.constant 0 : index
      %c0_23 = arith.constant 0 : index
      %34 = vector.load %arg9[%c0_22, %c0_23] : memref<1x128xf32, #tpu.memory_space<vmem>>, vector<1x128xf32>
      tpu.vector_store %arg9[%c0_22, %c0_23], %33 {strides = array<i32>} : memref<1x128xf32, #tpu.memory_space<vmem>>, vector<1x128xf32>,
    } else {
    }
    %c0_i32_12 = arith.constant 0 : i32
    %20 = arith.cmpi eq, %arg1, %c0_i32_12 : i32
    %21 = arith.extui %20 : i1 to i32
    %c0_i32_13 = arith.constant 0 : i32
    %22 = arith.cmpi ne, %21, %c0_i32_13 : i32
    scf.if %22 {
      %c0_18 = arith.constant 0 : index
      %c0_19 = arith.constant 0 : index
      %31 = vector.load %arg8[%c0_18, %c0_19] : memref<1x128xf32, #tpu.memory_space<vmem>>, vector<1x128xf32>
      %cst_20 = arith.constant dense<0.000000e+00> : vector<128xf32>
      %32 = vector.multi_reduction <add>, %14, %cst_20 [0] : vector<128x128xf32> to vector<128xf32>
      %33 = vector.shape_cast %32 : vector<128xf32> to vector<1x128xf32>
      %34 = arith.addf %31, %33 : vector<1x128xf32>
      %c0_21 = arith.constant 0 : index
      %c0_22 = arith.constant 0 : index
      %35 = vector.load %arg8[%c0_21, %c0_22] : memref<1x128xf32, #tpu.memory_space<vmem>>, vector<1x128xf32>
      tpu.vector_store %arg8[%c0_21, %c0_22], %34 {strides = array<i32>} : memref<1x128xf32, #tpu.memory_space<vmem>>, vector<1x128xf32>,
      %c0_23 = arith.constant 0 : index
      %c0_24 = arith.constant 0 : index
      %36 = vector.load %arg9[%c0_23, %c0_24] : memref<1x128xf32, #tpu.memory_space<vmem>>, vector<1x128xf32>
      %37 = arith.mulf %14, %14 : vector<128x128xf32>
      %cst_25 = arith.constant dense<0.000000e+00> : vector<128xf32>
      %38 = vector.multi_reduction <add>, %37, %cst_25 [0] : vector<128x128xf32> to vector<128xf32>
      %39 = vector.shape_cast %38 : vector<128xf32> to vector<1x128xf32>
      %40 = arith.addf %36, %39 : vector<1x128xf32>
      %c0_26 = arith.constant 0 : index
      %c0_27 = arith.constant 0 : index
      %41 = vector.load %arg9[%c0_26, %c0_27] : memref<1x128xf32, #tpu.memory_space<vmem>>, vector<1x128xf32>
      tpu.vector_store %arg9[%c0_26, %c0_27], %40 {strides = array<i32>} : memref<1x128xf32, #tpu.memory_space<vmem>>, vector<1x128xf32>,
    } else {
    }
    %c1_i32 = arith.constant 1 : i32
    %23 = arith.cmpi eq, %arg1, %c1_i32 : i32
    %c0_i32_14 = arith.constant 0 : i32
    %24 = arith.cmpi eq, %arg2, %c0_i32_14 : i32
    %25 = arith.andi %23, %24 : i1
    %26 = arith.extui %25 : i1 to i32
    %c0_i32_15 = arith.constant 0 : i32
    %27 = arith.cmpi ne, %26, %c0_i32_15 : i32
    scf.if %27 {
      %c0_18 = arith.constant 0 : index
      %c0_19 = arith.constant 0 : index
      %31 = vector.load %arg8[%c0_18, %c0_19] : memref<1x128xf32, #tpu.memory_space<vmem>>, vector<1x128xf32>
      %cst_20 = arith.constant 1.562500e-02 : f32
      %32 = vector.broadcast %cst_20 : f32 to vector<1x128xf32>
      %33 = arith.mulf %31, %32 : vector<1x128xf32>
      %c0_21 = arith.constant 0 : index
      %c0_22 = arith.constant 0 : index
      %34 = vector.load %arg9[%c0_21, %c0_22] : memref<1x128xf32, #tpu.memory_space<vmem>>, vector<1x128xf32>
      %cst_23 = arith.constant 1.562500e-02 : f32
      %35 = vector.broadcast %cst_23 : f32 to vector<1x128xf32>
      %36 = arith.mulf %34, %35 : vector<1x128xf32>
      %37 = arith.mulf %33, %33 : vector<1x128xf32>
      %38 = arith.subf %36, %37 : vector<1x128xf32>
      %c0_24 = arith.constant 0 : index
      %c0_25 = arith.constant 0 : index
      %39 = vector.load %arg10[%c0_24, %c0_25] : memref<1x128xf32, #tpu.memory_space<vmem>>, vector<1x128xf32>
      tpu.vector_store %arg10[%c0_24, %c0_25], %33 {strides = array<i32>} : memref<1x128xf32, #tpu.memory_space<vmem>>, vector<1x128xf32>,
      %cst_26 = arith.constant 0.000000e+00 : f32
      %40 = vector.broadcast %cst_26 : f32 to vector<1x128xf32>
      %41 = arith.maximumf %38, %40 : vector<1x128xf32>
      %cst_27 = arith.constant 9.99999974E-6 : f32
      %42 = vector.broadcast %cst_27 : f32 to vector<1x128xf32>
      %43 = arith.addf %41, %42 : vector<1x128xf32>
      %44 = math.rsqrt %43 : vector<1x128xf32>
      %c0_28 = arith.constant 0 : index
      %c0_29 = arith.constant 0 : index
      %45 = vector.load %arg11[%c0_28, %c0_29] : memref<1x128xf32, #tpu.memory_space<vmem>>, vector<1x128xf32>
      tpu.vector_store %arg11[%c0_28, %c0_29], %44 {strides = array<i32>} : memref<1x128xf32, #tpu.memory_space<vmem>>, vector<1x128xf32>,
    } else {
    }
    %c1_i32_16 = arith.constant 1 : i32
    %28 = arith.cmpi eq, %arg1, %c1_i32_16 : i32
    %29 = arith.extui %28 : i1 to i32
    %c0_i32_17 = arith.constant 0 : i32
    %30 = arith.cmpi ne, %29, %c0_i32_17 : i32
    scf.if %30 {
      %c0_18 = arith.constant 0 : index
      %c0_19 = arith.constant 0 : index
      %31 = vector.load %arg10[%c0_18, %c0_19] : memref<1x128xf32, #tpu.memory_space<vmem>>, vector<1x128xf32>
      %32 = vector.broadcast %31 : vector<1x128xf32> to vector<128x128xf32>
      %33 = arith.subf %14, %32 : vector<128x128xf32>
      %c0_20 = arith.constant 0 : index
      %c0_21 = arith.constant 0 : index
      %34 = vector.load %arg11[%c0_20, %c0_21] : memref<1x128xf32, #tpu.memory_space<vmem>>, vector<1x128xf32>
      %35 = vector.broadcast %34 : vector<1x128xf32> to vector<128x128xf32>
      %36 = arith.mulf %33, %35 : vector<128x128xf32>
      %cst_22 = arith.constant 0.000000e+00 : f32
      %37 = vector.broadcast %cst_22 : f32 to vector<128x128xf32>
      %38 = arith.maximumf %36, %37 : vector<128x128xf32>
      %c0_23 = arith.constant 0 : index
      %c0_24 = arith.constant 0 : index
      %c0_25 = arith.constant 0 : index
      %39 = vector.load %arg6[%c0_23, %c0_24, %c0_25] : memref<1x128x128xf32, #tpu.memory_space<vmem>>, vector<1x128x128xf32>
      %40 = vector.shape_cast %39 : vector<1x128x128xf32> to vector<128x128xf32>
      %41 = vector.shape_cast %38 : vector<128x128xf32> to vector<1x128x128xf32>
      tpu.vector_store %arg6[%c0_23, %c0_24, %c0_25], %41 {strides = array<i32>} : memref<1x128x128xf32, #tpu.memory_space<vmem>>, vector<1x128x128xf32>,
    } else {
    }
    return
  }
  func.func @transform_0(%arg0: i32, %arg1: i32, %arg2: i32) -> (i32, i32, i32) {
    %c0_i32 = arith.constant 0 : i32
    %c0_i32_0 = arith.constant 0 : i32
    %c0_i32_1 = arith.constant 0 : i32
    return %arg0, %c0_i32, %c0_i32_0 : i32, i32, i32
  }
  func.func @transform_1(%arg0: i32, %arg1: i32, %arg2: i32) -> (i32, i32) {
    %c0_i32 = arith.constant 0 : i32
    %c0_i32_0 = arith.constant 0 : i32
    %c0_i32_1 = arith.constant 0 : i32
    return %c0_i32, %c0_i32_0 : i32, i32
  }
  func.func @transform_2(%arg0: i32, %arg1: i32, %arg2: i32) -> (i32, i32) {
    %c0_i32 = arith.constant 0 : i32
    %c0_i32_0 = arith.constant 0 : i32
    %c0_i32_1 = arith.constant 0 : i32
    return %c0_i32, %c0_i32_0 : i32, i32
  }
  func.func @transform_3(%arg0: i32, %arg1: i32, %arg2: i32) -> (i32, i32, i32) {
    %0 = arith.muli %arg1, %arg2 : i32
    %c0_i32 = arith.constant 0 : i32
    %c0_i32_0 = arith.constant 0 : i32
    return %arg0, %0, %c0_i32 : i32, i32, i32
  }
}

</mosaic_0001>

<llo_original>
// kernel: encoder_block.1
$region0: #{encoder_block.1}
  #allocation0 [shape = 'u32[]', space=smem, size = 0x4, offset = 0x4, fixed_abs, tag = 'smem constant byte address 0x4 - core index']
  #allocation1 [shape = 'u32[144,128]{1,0:T(1,128)}', space=vmem, size = 0x12000, scoped, tag = 'internal scratch']
  #allocation2 [shape = 'bf16[128,64]{1,0:T(16,128)(2,1)}', space=vmem, size = 0x8000, scoped, tag = 'scratch operand']
  #allocation3 [shape = 'f32[1,128]{1,0:T(1,128)}', space=vmem, size = 0x200, scoped, tag = 'scratch operand']
  #allocation4 [shape = 'f32[1,128]{1,0:T(1,128)}', space=vmem, size = 0x200, scoped, tag = 'scratch operand']
  #allocation5 [shape = 'f32[1,128]{1,0:T(1,128)}', space=vmem, size = 0x200, scoped, tag = 'scratch operand']
  #allocation6 [shape = 'f32[1,128]{1,0:T(1,128)}', space=vmem, size = 0x200, scoped, tag = 'scratch operand']
  %s0 = inlined_call_operand.vmem [shape: bf16[2,144,32], index: 0, kind: input, shape index: {}]
  %s1 = inlined_call_operand.vmem [shape: bf16[64,128], index: 1, kind: input, shape index: {}]
  %s2 = inlined_call_operand.vmem [shape: f32[1,128], index: 2, kind: input, shape index: {}]
  %s3 = inlined_call_operand.vmem [shape: f32[2,128,128], index: 3, kind: output, shape index: {}]
  %s4 = sld [smem:[#allocation0]]
  $region61: #{encoder_block.1} parent=0
    _
  %s6 = ssub.s32 1, %s4
  %s7 = scalar_select 0, %s6, %s4
  loop: start=0, step=1, limit=6
  $region2: #{encoder_block.1} parent=0 // loop_pre_header
    _
  $region3: #{encoder_block.1} parent=0 // loop_header
    %s9 = sphi 0, %s13
    %p10 = scmp.ge.s32.totalorder %s9, 6
    %s16 = sphi 0, %s35
    %s17 = sphi 0, %s31
    %s18 = sphi 0, %s27
    %s19 = sphi 0, %s16
    %s20 = sphi 0, %s17
    %s21 = sphi 0, %s18
    %s22 = sphi 0, %s19
    %s23 = sphi 0, %s20
    %s24 = sphi 0, %s21
    %s38 = sphi 0, %s40
    %s41 = sphi 0, %s38
    %s42 = sphi 0, %s41
    %s58 = sphi 0, %s42
    %s62 = sphi 0, %s62
    %s64 = sphi 0, %s62
    %s65 = sphi 0, %s64
    %s79 = sphi 0, %s65
    %s83 = sphi 0, %s83
    %s85 = sphi 0, %s83
    %s86 = sphi 0, %s85
    %s100 = sphi 0, %s86
    %s110 = sphi 0, %s112
    %s113 = sphi 0, %s110
    %s114 = sphi 0, %s113
    %s130 = sphi 0, %s114
  $region4: #{encoder_block.1} parent=0 // loop_header_branch
    %12 = sbr.rel (%p10) target = $region8
  $region5: #{encoder_block.1} parent=0 // loop_body
    %s14 = ssub.s32 %s9, 1
    %s15 = ssub.s32 %s9, 2
    %s25 = sadd.s32 1, %s18
    %p26 = scmp.ge.s32.totalorder %s25, 1
    %s27 = scalar_select %p26, 0, %s25
    %s28 = sadd.s32 1, %s17
    %s29 = scalar_select %p26, %s28, %s17
    %p30 = scmp.ge.s32.totalorder %s29, 2
    %s31 = scalar_select %p30, 0, %s29
    %s32 = sadd.s32 1, %s16
    %s33 = scalar_select %p30, %s32, %s16
    %p34 = scmp.ge.s32.totalorder %s33, 2
    %s35 = scalar_select %p34, 0, %s33
    %s36 = ssub.s32 %s16, %s35
    %p37 = scmp.eq.s32.totalorder %s36, 0
    %s39 = sadd.s32 %s38, 1
    %s40 = scalar_select %p37, %s38, %s39
    %p43 = pneg %p37
    %p44 = scmp.eq.s32.totalorder %s9, 3
    %p45 = por %p43, %p44
    %p46 = scmp.ne.s32.totalorder %s38, %s41
    %p47 = scmp.eq.s32.totalorder %s9, 0
    %p48 = por %p46, %p47
    %p49 = scmp.ne.s32.totalorder %s38, %s41
    %p50 = scmp.eq.s32.totalorder %s14, 3
    %p51 = por %p49, %p50
    %p52 = scmp.ne.s32.totalorder %s41, %s42
    %p53 = scmp.eq.s32.totalorder %s14, 0
    %p54 = por %p52, %p53
    %p55 = scmp.ne.s32.totalorder %s41, %s42
    %p56 = scmp.eq.s32.totalorder %s15, 3
    %p57 = por %p55, %p56
    %p59 = scmp.ne.s32.totalorder %s42, %s58
    %p60 = scmp.eq.s32.totalorder %s15, 0
    %p61 = por %p59, %p60
    %s63 = sadd.s32 %s62, 1
    %p66 = scmp.eq.s32.totalorder %s9, 3
    %p67 = scmp.ne.s32.totalorder %s62, %s64
    %p68 = scmp.eq.s32.totalorder %s9, 0
    %p69 = por %p67, %p68
    %p70 = scmp.ne.s32.totalorder %s62, %s64
    %p71 = scmp.eq.s32.totalorder %s14, 3
    %p72 = por %p70, %p71
    %p73 = scmp.ne.s32.totalorder %s64, %s65
    %p74 = scmp.eq.s32.totalorder %s14, 0
    %p75 = por %p73, %p74
    %p76 = scmp.ne.s32.totalorder %s64, %s65
    %p77 = scmp.eq.s32.totalorder %s15, 3
    %p78 = por %p76, %p77
    %p80 = scmp.ne.s32.totalorder %s65, %s79
    %p81 = scmp.eq.s32.totalorder %s15, 0
    %p82 = por %p80, %p81
    %s84 = sadd.s32 %s83, 1
    %p87 = scmp.eq.s32.totalorder %s9, 3
    %p88 = scmp.ne.s32.totalorder %s83, %s85
    %p89 = scmp.eq.s32.totalorder %s9, 0
    %p90 = por %p88, %p89
    %p91 = scmp.ne.s32.totalorder %s83, %s85
    %p92 = scmp.eq.s32.totalorder %s14, 3
    %p93 = por %p91, %p92
    %p94 = scmp.ne.s32.totalorder %s85, %s86
    %p95 = scmp.eq.s32.totalorder %s14, 0
    %p96 = por %p94, %p95
    %p97 = scmp.ne.s32.totalorder %s85, %s86
    %p98 = scmp.eq.s32.totalorder %s15, 3
    %p99 = por %p97, %p98
    %p101 = scmp.ne.s32.totalorder %s86, %s100
    %p102 = scmp.eq.s32.totalorder %s15, 0
    %p103 = por %p101, %p102
    %s104 = smul.u32 %s17, %s18
    %s105 = smul.u32 %s31, %s27
    %s106 = ssub.s32 %s16, %s35
    %s107 = ssub.s32 %s104, %s105
    %s108 = sor.u32 %s106, %s107
    %p109 = scmp.eq.s32.totalorder %s108, 0
    %s111 = sadd.s32 %s110, 1
    %s112 = scalar_select %p109, %s110, %s111
    %p115 = pneg %p109
    %p116 = scmp.eq.s32.totalorder %s9, 3
    %p117 = por %p115, %p116
    %p118 = scmp.ne.s32.totalorder %s110, %s113
    %p119 = scmp.eq.s32.totalorder %s9, 0
    %p120 = por %p118, %p119
    %p121 = scmp.ne.s32.totalorder %s110, %s113
    %p122 = scmp.eq.s32.totalorder %s14, 3
    %p123 = por %p121, %p122
    %p124 = scmp.ne.s32.totalorder %s113, %s114
    %p125 = scmp.eq.s32.totalorder %s14, 0
    %p126 = por %p124, %p125
    %p127 = scmp.ne.s32.totalorder %s113, %s114
    %p128 = scmp.eq.s32.totalorder %s15, 3
    %p129 = por %p127, %p128
    %p131 = scmp.ne.s32.totalorder %s114, %s130
    %p132 = scmp.eq.s32.totalorder %s15, 0
    %p133 = por %p131, %p132
    %p134 = scmp.le.s32.totalorder 1, %s9
    %p135 = scmp.lt.s32.totalorder %s9, 5
    %p136 = pnand %p134, %p135
    %p137 = pneg %p136
    // Predicated region
    $region9: #{encoder_block.1} parent=5 // pred_check
      _
    $region10: #{encoder_block.1} parent=5 // pred_check_branch
      %139 = sbr.rel (%p136) target = $region12
    $region11: #{encoder_block.1} parent=5 // pred_region
      %s140 = ssub.s32 %s9, 1
      // Predicated region
      $region13: #{encoder_block.1} parent=11 // pred_check
        %p141 = pneg %p75
      $region14: #{encoder_block.1} parent=11 // pred_check_branch
        %143 = sbr.rel (%p141) target = $region16
      $region15: #{encoder_block.1} parent=11 // pred_region
        _
      $region16: #{encoder_block.1} parent=11 // pred_fallthru
        _
      // Predicated region
      $region17: #{encoder_block.1} parent=11 // pred_check
        %p144 = pneg %p96
      $region18: #{encoder_block.1} parent=11 // pred_check_branch
        %146 = sbr.rel (%p144) target = $region20
      $region19: #{encoder_block.1} parent=11 // pred_region
        _
      $region20: #{encoder_block.1} parent=11 // pred_fallthru
        _
    $region12: #{encoder_block.1} parent=5 // pred_fallthru
      _
    %p147 = scmp.lt.s32.totalorder %s9, 4
    // Predicated region
    $region21: #{encoder_block.1} parent=5 // pred_check
      %p148 = pneg %p147
    $region22: #{encoder_block.1} parent=5 // pred_check_branch
      %150 = sbr.rel (%p148) target = $region24
    $region23: #{encoder_block.1} parent=5 // pred_region
      // Predicated region
      $region25: #{encoder_block.1} parent=23 // pred_check
        %p151 = pneg %p48
      $region26: #{encoder_block.1} parent=23 // pred_check_branch
        %153 = sbr.rel (%p151) target = $region28
      $region27: #{encoder_block.1} parent=23 // pred_region
        %p154 = scmp.lt.s32.totalorder %s16, 1
        %s155 = scalar_select %p154, %s16, 1
        %s156 = smul.addr %s155, 18
        %s157 = smul.addr %s156, 4
        %s158 = scalar_lea.vmem %s0, %s157
      $region28: #{encoder_block.1} parent=23 // pred_fallthru
        _
    $region24: #{encoder_block.1} parent=5 // pred_fallthru
      _
    %p159 = scmp.le.s32.totalorder 1, %s9
    %p160 = scmp.lt.s32.totalorder %s9, 5
    %p161 = pnand %p159, %p160
    %p162 = pneg %p161
    // Predicated region
    $region29: #{encoder_block.1} parent=5 // pred_check
      _
    $region30: #{encoder_block.1} parent=5 // pred_check_branch
      %164 = sbr.rel (%p161) target = $region32
    $region31: #{encoder_block.1} parent=5 // pred_region
      %s165 = ssub.s32 %s9, 1
      %p166 = scmp.lt.s32.totalorder %s19, 1
      %s167 = scalar_select %p166, %s19, 1
      %s168 = smul.addr %s167, 18
      %s169 = smul.addr %s168, 4
      %s170 = scalar_lea.vmem %s0, %s169
      %p171 = pneg %p54
      %p172 = pneg %p51
      %p173 = pneg %p75
      %p174 = pneg %p72
      %p175 = pneg %p96
      %p176 = pneg %p93
      %p177 = pneg %p126
      %p178 = pneg %p123
      %s179 = smul.u32 %s20, %s21
      %s180 = smul.u32 16, %s179
      %p181 = scmp.lt.s32.totalorder %s19, 1
      %s182 = scalar_select %p181, %s19, 1
      %p183 = scmp.lt.s32.totalorder %s180, 15
      %s184 = scalar_select %p183, %s180, 15
      %s185 = smul.addr %s182, 16
      %s186 = sadd.s32 %s184, %s185
      %s187 = smul.addr %s186, 8
      %s188 = scalar_lea.vmem %s3, %s187
      %p189 = scmp.lt.s32.totalorder %s19, 1
      %s190 = scalar_select %p189, %s19, 1
      %s191 = smul.addr %s190, 18
      %s192 = smul.addr %s191, 4
      %s193 = scalar_lea.vmem %s0, %s192
      %s194 = smul.u32 %s20, %s21
      %s195 = smul.u32 16, %s194
      %p196 = scmp.lt.s32.totalorder %s19, 1
      %s197 = scalar_select %p196, %s19, 1
      %p198 = scmp.lt.s32.totalorder %s195, 15
      %s199 = scalar_select %p198, %s195, 15
      %s200 = smul.addr %s197, 16
      %s201 = sadd.s32 %s199, %s200
      %s202 = smul.addr %s201, 8
      %s203 = scalar_lea.vmem %s3, %s202
      %s204 = smul.u32 %s20, %s21
      %s205 = smul.u32 16, %s204
      %s207 = smul.u32 %s21, 128
      %s208 = sadd.s32 %s207, 16
      %s209 = sshra.s32 %s207, 3
      %s210 = sand.u32 %s207, 7
      %s211 = smul.addr %s209, 4
      %s212 = scalar_lea.vmem %s193, %s211
      %v213 = vld [vmem:[%s212] sm:$0xf]
      %v214 = vld [vmem:[%s212 + $0x4] sm:$0xf]
      %v215 = vld [vmem:[%s212 + $0x8] sm:$0xf]
      %v216 = vld [vmem:[%s212 + $0xc] sm:$0xf]
      %v217 = vld [vmem:[%s212 + $0x10] sm:$0xf]
      %v218 = vld [vmem:[%s212 + $0x14] sm:$0xf]
      %v219 = vld [vmem:[%s212 + $0x18] sm:$0xf]
      %v220 = vld [vmem:[%s212 + $0x1c] sm:$0xf]
      %v221 = vld [vmem:[%s212 + $0x20] sm:$0xf]
      %v222 = vld [vmem:[%s212 + $0x24] sm:$0xf]
      %v223 = vld [vmem:[%s212 + $0x28] sm:$0xf]
      %v224 = vld [vmem:[%s212 + $0x2c] sm:$0xf]
      %v225 = vld [vmem:[%s212 + $0x30] sm:$0xf]
      %v226 = vld [vmem:[%s212 + $0x34] sm:$0xf]
      %v227 = vld [vmem:[%s212 + $0x38] sm:$0xf]
      %v228 = vld [vmem:[%s212 + $0x3c] sm:$0xf]
      %v245 = vunpack.c.l.b16 %v213
      %v246 = vunpack.c.l.b16 %v214
      %v247 = vunpack.c.l.b16 %v215
      %v248 = vunpack.c.l.b16 %v216
      %v249 = vunpack.c.l.b16 %v217
      %v250 = vunpack.c.l.b16 %v218
      %v251 = vunpack.c.l.b16 %v219
      %v252 = vunpack.c.l.b16 %v220
      %v253 = vunpack.c.l.b16 %v221
      %v254 = vunpack.c.l.b16 %v222
      %v255 = vunpack.c.l.b16 %v223
      %v256 = vunpack.c.l.b16 %v224
      %v257 = vunpack.c.l.b16 %v225
      %v258 = vunpack.c.l.b16 %v226
      %v259 = vunpack.c.l.b16 %v227
      %v260 = vunpack.c.l.b16 %v228
      %v261 = vpack.c.b16 %v246, %v245
      %v262 = vpack.c.b16 %v248, %v247
      %v263 = vpack.c.b16 %v250, %v249
      %v264 = vpack.c.b16 %v252, %v251
      %v265 = vpack.c.b16 %v254, %v253
      %v266 = vpack.c.b16 %v256, %v255
      %v267 = vpack.c.b16 %v258, %v257
      %v268 = vpack.c.b16 %v260, %v259
      %vm277 = vcmask 261120
      %278 = vst.msk [vmem:[#allocation2] sm:$0xff] %vm277, %v261
      %279 = vst.msk [vmem:[#allocation2 + $0x8] sm:$0xff] %vm277, %v262
      %280 = vst.msk [vmem:[#allocation2 + $0x10] sm:$0xff] %vm277, %v263
      %281 = vst.msk [vmem:[#allocation2 + $0x18] sm:$0xff] %vm277, %v264
      %282 = vst.msk [vmem:[#allocation2 + $0x20] sm:$0xff] %vm277, %v265
      %283 = vst.msk [vmem:[#allocation2 + $0x28] sm:$0xff] %vm277, %v266
      %284 = vst.msk [vmem:[#allocation2 + $0x30] sm:$0xff] %vm277, %v267
      %285 = vst.msk [vmem:[#allocation2 + $0x38] sm:$0xff] %vm277, %v268
      %s286 = sshra.s32 %s208, 3
      %s287 = sand.u32 %s208, 7
      %s288 = smul.addr %s286, 4
      %s289 = scalar_lea.vmem %s193, %s288
      %v290 = vld [vmem:[%s289] sm:$0xf]
      %v291 = vld [vmem:[%s289 + $0x4] sm:$0xf]
      %v292 = vld [vmem:[%s289 + $0x8] sm:$0xf]
      %v293 = vld [vmem:[%s289 + $0xc] sm:$0xf]
      %v294 = vld [vmem:[%s289 + $0x10] sm:$0xf]
      %v295 = vld [vmem:[%s289 + $0x14] sm:$0xf]
      %v296 = vld [vmem:[%s289 + $0x18] sm:$0xf]
      %v297 = vld [vmem:[%s289 + $0x1c] sm:$0xf]
      %v298 = vld [vmem:[%s289 + $0x20] sm:$0xf]
      %v299 = vld [vmem:[%s289 + $0x24] sm:$0xf]
      %v300 = vld [vmem:[%s289 + $0x28] sm:$0xf]
      %v301 = vld [vmem:[%s289 + $0x2c] sm:$0xf]
      %v302 = vld [vmem:[%s289 + $0x30] sm:$0xf]
      %v303 = vld [vmem:[%s289 + $0x34] sm:$0xf]
      %v304 = vld [vmem:[%s289 + $0x38] sm:$0xf]
      %v305 = vld [vmem:[%s289 + $0x3c] sm:$0xf]
      %v322 = vunpack.c.l.b16 %v290
      %v323 = vunpack.c.l.b16 %v291
      %v324 = vunpack.c.l.b16 %v292
      %v325 = vunpack.c.l.b16 %v293
      %v326 = vunpack.c.l.b16 %v294
      %v327 = vunpack.c.l.b16 %v295
      %v328 = vunpack.c.l.b16 %v296
      %v329 = vunpack.c.l.b16 %v297
      %v330 = vunpack.c.l.b16 %v298
      %v331 = vunpack.c.l.b16 %v299
      %v332 = vunpack.c.l.b16 %v300
      %v333 = vunpack.c.l.b16 %v301
      %v334 = vunpack.c.l.b16 %v302
      %v335 = vunpack.c.l.b16 %v303
      %v336 = vunpack.c.l.b16 %v304
      %v337 = vunpack.c.l.b16 %v305
      %v338 = vpack.c.b16 %v323, %v322
      %v339 = vpack.c.b16 %v325, %v324
      %v340 = vpack.c.b16 %v327, %v326
      %v341 = vpack.c.b16 %v329, %v328
      %v342 = vpack.c.b16 %v331, %v330
      %v343 = vpack.c.b16 %v333, %v332
      %v344 = vpack.c.b16 %v335, %v334
      %v345 = vpack.c.b16 %v337, %v336
      %346 = vrot.lane.b32.xlu0 %v338, 32
      %v347 = vpop.permute.xlu0 %346
      %348 = vrot.lane.b32.xlu0 %v339, 32
      %v349 = vpop.permute.xlu0 %348
      %350 = vrot.lane.b32.xlu0 %v340, 32
      %v351 = vpop.permute.xlu0 %350
      %352 = vrot.lane.b32.xlu0 %v341, 32
      %v353 = vpop.permute.xlu0 %352
      %354 = vrot.lane.b32.xlu0 %v342, 32
      %v355 = vpop.permute.xlu0 %354
      %356 = vrot.lane.b32.xlu0 %v343, 32
      %v357 = vpop.permute.xlu0 %356
      %358 = vrot.lane.b32.xlu0 %v344, 32
      %v359 = vpop.permute.xlu0 %358
      %360 = vrot.lane.b32.xlu0 %v345, 32
      %v361 = vpop.permute.xlu0 %360
      %vm370 = vcmask 523520
      %371 = vst.msk [vmem:[#allocation2] sm:$0xff] %vm370, %v347
      %372 = vst.msk [vmem:[#allocation2 + $0x8] sm:$0xff] %vm370, %v349
      %373 = vst.msk [vmem:[#allocation2 + $0x10] sm:$0xff] %vm370, %v351
      %374 = vst.msk [vmem:[#allocation2 + $0x18] sm:$0xff] %vm370, %v353
      %375 = vst.msk [vmem:[#allocation2 + $0x20] sm:$0xff] %vm370, %v355
      %376 = vst.msk [vmem:[#allocation2 + $0x28] sm:$0xff] %vm370, %v357
      %377 = vst.msk [vmem:[#allocation2 + $0x30] sm:$0xff] %vm370, %v359
      %378 = vst.msk [vmem:[#allocation2 + $0x38] sm:$0xff] %vm370, %v361
      %v379 = vld [vmem:[#allocation2] sm:$0xff]
      %v380 = vld [vmem:[#allocation2 + $0x8] sm:$0xff]
      %v381 = vld [vmem:[#allocation2 + $0x10] sm:$0xff]
      %v382 = vld [vmem:[#allocation2 + $0x18] sm:$0xff]
      %v383 = vld [vmem:[#allocation2 + $0x20] sm:$0xff]
      %v384 = vld [vmem:[#allocation2 + $0x28] sm:$0xff]
      %v385 = vld [vmem:[#allocation2 + $0x30] sm:$0xff]
      %v386 = vld [vmem:[#allocation2 + $0x38] sm:$0xff]
      %v387 = vld [vmem:[%s1] sm:$0xf]
      %v388 = vld [vmem:[%s1 + $0x4] sm:$0xf]
      %v389 = vld [vmem:[%s1 + $0x8] sm:$0xf]
      %v390 = vld [vmem:[%s1 + $0xc] sm:$0xf]
      %v391 = vld [vmem:[%s1 + $0x10] sm:$0xf]
      %v392 = vld [vmem:[%s1 + $0x14] sm:$0xf]
      %v393 = vld [vmem:[%s1 + $0x18] sm:$0xf]
      %v394 = vld [vmem:[%s1 + $0x1c] sm:$0xf]
      %v403 = vunpack.c.l.b16 %v387
      %v404 = vunpack.c.l.b16 %v388
      %v405 = vunpack.c.l.b16 %v389
      %v406 = vunpack.c.l.b16 %v390
      %v407 = vunpack.c.l.b16 %v391
      %v408 = vunpack.c.l.b16 %v392
      %v409 = vunpack.c.l.b16 %v393
      %v410 = vunpack.c.l.b16 %v394
      %v411 = vpack.c.b16 %v404, %v403
      %v412 = vpack.c.b16 %v406, %v405
      %v413 = vpack.c.b16 %v408, %v407
      %v414 = vpack.c.b16 %v410, %v409
      %vm419 = vcmask 523264
      %v421 = vsel %vm419, %v379, 0
      %v424 = vsel %vm419, %v380, 0
      %v427 = vsel %vm419, %v381, 0
      %v430 = vsel %vm419, %v382, 0
      %v433 = vsel %vm419, %v383, 0
      %v436 = vsel %vm419, %v384, 0
      %v439 = vsel %vm419, %v385, 0
      %v442 = vsel %vm419, %v386, 0
      %444 = vmatprep.subr.bf16.mxu0 0
      %445 = vmatpush1.bf16.msra.mxu0 %v411
      %446 = vmatprep.subr.bf16.mxu0 0
      %447 = vmatpush1.bf16.msra.mxu0 %v412
      %448 = vmatprep.subr.bf16.mxu0 0
      %449 = vmatpush1.bf16.msra.mxu0 %v413
      %450 = vmatprep.subr.bf16.mxu0 0
      %451 = vmatpush1.bf16.msra.mxu0 %v414
      %452 = vmatprep.subr.bf16.mxu0 0
      %453 = vmatpush1.bf16.msra.mxu0 0
      %454 = vmatprep.subr.bf16.mxu0 0
      %455 = vmatpush1.bf16.msra.mxu0 0
      %456 = vmatprep.subr.bf16.mxu0 0
      %457 = vmatpush1.bf16.msra.mxu0 0
      %458 = vmatprep.subr.bf16.mxu0 0
      %459 = vmatpush1.bf16.msra.mxu0 0
      %460 = vmatprep.subr.bf16.mxu0 0
      %461 = vmatpush1.bf16.msra.mxu0 0
      %462 = vmatprep.subr.bf16.mxu0 0
      %463 = vmatpush1.bf16.msra.mxu0 0
      %464 = vmatprep.subr.bf16.mxu0 0
      %465 = vmatpush1.bf16.msra.mxu0 0
      %466 = vmatprep.subr.bf16.mxu0 0
      %467 = vmatpush1.bf16.msra.mxu0 0
      %468 = vmatprep.subr.bf16.mxu0 0
      %469 = vmatpush1.bf16.msra.mxu0 0
      %470 = vmatprep.subr.bf16.mxu0 0
      %471 = vmatpush1.bf16.msra.mxu0 0
      %472 = vmatprep.subr.bf16.mxu0 0
      %473 = vmatpush1.bf16.msra.mxu0 0
      %474 = vmatprep.subr.bf16.mxu0 0
      %475 = vmatpush1.bf16.msra.mxu0 0
      %476 = vmatprep.mubr.bf16.mxu0 0
      %477 = vmatmul.mubr.bf16.gmra.mrb[0].mxu0 %v421
      %v478 = vpop.f32.mrb[0].mxu0
      %v479 = vadd.f32 0.0, %v478
      %v480 = vpop.f32.mrb[0].mxu0
      %v481 = vpop.f32.mrb[0].mxu0
      %v482 = vadd.f32 0.0, %v481
      %v483 = vpop.f32.mrb[0].mxu0
      %484 = vmatprep.mubr.bf16.mxu0 0
      %485 = vmatmul.mubr.bf16.gmra.mrb[0].mxu0 %v424
      %v486 = vpop.f32.mrb[0].mxu0
      %v487 = vadd.f32 0.0, %v486
      %v488 = vpop.f32.mrb[0].mxu0
      %v489 = vpop.f32.mrb[0].mxu0
      %v490 = vadd.f32 0.0, %v489
      %v491 = vpop.f32.mrb[0].mxu0
      %492 = vmatprep.mubr.bf16.mxu0 0
      %493 = vmatmul.mubr.bf16.gmra.mrb[0].mxu0 %v427
      %v494 = vpop.f32.mrb[0].mxu0
      %v495 = vadd.f32 0.0, %v494
      %v496 = vpop.f32.mrb[0].mxu0
      %v497 = vpop.f32.mrb[0].mxu0
      %v498 = vadd.f32 0.0, %v497
      %v499 = vpop.f32.mrb[0].mxu0
      %500 = vmatprep.mubr.bf16.mxu0 0
      %501 = vmatmul.mubr.bf16.gmra.mrb[0].mxu0 %v430
      %v502 = vpop.f32.mrb[0].mxu0
      %v503 = vadd.f32 0.0, %v502
      %v504 = vpop.f32.mrb[0].mxu0
      %v505 = vpop.f32.mrb[0].mxu0
      %v506 = vadd.f32 0.0, %v505
      %v507 = vpop.f32.mrb[0].mxu0
      %508 = vmatprep.mubr.bf16.mxu0 0
      %509 = vmatmul.mubr.bf16.gmra.mrb[0].mxu0 %v433
      %v510 = vpop.f32.mrb[0].mxu0
      %v511 = vadd.f32 0.0, %v510
      %v512 = vpop.f32.mrb[0].mxu0
      %v513 = vpop.f32.mrb[0].mxu0
      %v514 = vadd.f32 0.0, %v513
      %v515 = vpop.f32.mrb[0].mxu0
      %516 = vmatprep.mubr.bf16.mxu0 0
      %517 = vmatmul.mubr.bf16.gmra.mrb[0].mxu0 %v436
      %v518 = vpop.f32.mrb[0].mxu0
      %v519 = vadd.f32 0.0, %v518
      %v520 = vpop.f32.mrb[0].mxu0
      %v521 = vpop.f32.mrb[0].mxu0
      %v522 = vadd.f32 0.0, %v521
      %v523 = vpop.f32.mrb[0].mxu0
      %524 = vmatprep.mubr.bf16.mxu0 0
      %525 = vmatmul.mubr.bf16.gmra.mrb[0].mxu0 %v439
      %v526 = vpop.f32.mrb[0].mxu0
      %v527 = vadd.f32 0.0, %v526
      %v528 = vpop.f32.mrb[0].mxu0
      %v529 = vpop.f32.mrb[0].mxu0
      %v530 = vadd.f32 0.0, %v529
      %v531 = vpop.f32.mrb[0].mxu0
      %532 = vmatprep.mubr.bf16.mxu0 0
      %533 = vmatmul.mubr.bf16.gmra.mrb[0].mxu0 %v442
      %v534 = vpop.f32.mrb[0].mxu0
      %v535 = vadd.f32 0.0, %v534
      %v536 = vpop.f32.mrb[0].mxu0
      %v537 = vpop.f32.mrb[0].mxu0
      %v538 = vadd.f32 0.0, %v537
      %v539 = vpop.f32.mrb[0].mxu0
      %540 = vdwg.mxu0
      %p541 = scmp.eq.s32.totalorder %s20, 0
      %p542 = scmp.eq.s32.totalorder %s21, 0
      %p543 = pnand %p541, %p542
      %p544 = pneg %p543
      // Predicated region
      $region33: #{encoder_block.1} parent=31 // pred_check
        _
      $region34: #{encoder_block.1} parent=31 // pred_check_branch
        %546 = sbr.rel (%p543) target = $region36
      $region35: #{encoder_block.1} parent=31 // pred_region
        %547 = vst [vmem:[#allocation3] sm:$0x1] 0.0
        %548 = vst [vmem:[#allocation4] sm:$0x1] 0.0
      $region36: #{encoder_block.1} parent=31 // pred_fallthru
        _
      // Predicated region
      $region37: #{encoder_block.1} parent=31 // pred_check
        %p549 = pneg %p541
      $region38: #{encoder_block.1} parent=31 // pred_check_branch
        %551 = sbr.rel (%p549) target = $region40
      $region39: #{encoder_block.1} parent=31 // pred_region
        %v552 = vld [vmem:[#allocation3] sm:$0x1]
        %v553 = vadd.f32 %v479, %v482
        %v554 = vadd.f32 %v553, %v487
        %v555 = vadd.f32 %v554, %v490
        %v556 = vadd.f32 %v555, %v495
        %v557 = vadd.f32 %v556, %v498
        %v558 = vadd.f32 %v557, %v503
        %v559 = vadd.f32 %v558, %v506
        %v560 = vadd.f32 %v559, %v511
        %v561 = vadd.f32 %v560, %v514
        %v562 = vadd.f32 %v561, %v519
        %v563 = vadd.f32 %v562, %v522
        %v564 = vadd.f32 %v563, %v527
        %v565 = vadd.f32 %v564, %v530
        %v566 = vadd.f32 %v565, %v535
        %v567 = vadd.f32 %v566, %v538
        %v568 = vrot.slane %v567, 4
        %v569 = vadd.f32 %v567, %v568
        %v570 = vrot.slane %v569, 2
        %v571 = vadd.f32 %v569, %v570
        %v572 = vrot.slane %v571, 1
        %v573 = vadd.f32 %v571, %v572
        %v574 = vadd.f32 %v552, %v573
        %575 = vst [vmem:[#allocation3] sm:$0x1] %v574
        %v576 = vld [vmem:[#allocation4] sm:$0x1]
        %v577 = vmul.f32 %v479, %v479
        %v578 = vmul.f32 %v482, %v482
        %v579 = vmul.f32 %v487, %v487
        %v580 = vmul.f32 %v490, %v490
        %v581 = vmul.f32 %v495, %v495
        %v582 = vmul.f32 %v498, %v498
        %v583 = vmul.f32 %v503, %v503
        %v584 = vmul.f32 %v506, %v506
        %v585 = vmul.f32 %v511, %v511
        %v586 = vmul.f32 %v514, %v514
        %v587 = vmul.f32 %v519, %v519
        %v588 = vmul.f32 %v522, %v522
        %v589 = vmul.f32 %v527, %v527
        %v590 = vmul.f32 %v530, %v530
        %v591 = vmul.f32 %v535, %v535
        %v592 = vmul.f32 %v538, %v538
        %v593 = vadd.f32 %v577, %v578
        %v594 = vadd.f32 %v593, %v579
        %v595 = vadd.f32 %v594, %v580
        %v596 = vadd.f32 %v595, %v581
        %v597 = vadd.f32 %v596, %v582
        %v598 = vadd.f32 %v597, %v583
        %v599 = vadd.f32 %v598, %v584
        %v600 = vadd.f32 %v599, %v585
        %v601 = vadd.f32 %v600, %v586
        %v602 = vadd.f32 %v601, %v587
        %v603 = vadd.f32 %v602, %v588
        %v604 = vadd.f32 %v603, %v589
        %v605 = vadd.f32 %v604, %v590
        %v606 = vadd.f32 %v605, %v591
        %v607 = vadd.f32 %v606, %v592
        %v608 = vrot.slane %v607, 4
        %v609 = vadd.f32 %v607, %v608
        %v610 = vrot.slane %v609, 2
        %v611 = vadd.f32 %v609, %v610
        %v612 = vrot.slane %v611, 1
        %v613 = vadd.f32 %v611, %v612
        %v614 = vadd.f32 %v576, %v613
        %615 = vst [vmem:[#allocation4] sm:$0x1] %v614
      $region40: #{encoder_block.1} parent=31 // pred_fallthru
        _
      %p616 = scmp.eq.s32.totalorder %s20, 1
      %p617 = pnand %p616, %p542
      %p618 = pneg %p617
      // Predicated region
      $region41: #{encoder_block.1} parent=31 // pred_check
        _
      $region42: #{encoder_block.1} parent=31 // pred_check_branch
        %620 = sbr.rel (%p617) target = $region44
      $region43: #{encoder_block.1} parent=31 // pred_region
        %v621 = vld [vmem:[#allocation3] sm:$0x1]
        %v622 = vmul.f32 %v621, 0.015625
        %v623 = vld [vmem:[#allocation4] sm:$0x1]
        %v624 = vmul.f32 %v623, 0.015625
        %v625 = vmul.f32 %v622, %v622
        %v626 = vsub.f32 %v624, %v625
        %627 = vst [vmem:[#allocation5] sm:$0x1] %v622
        %v628 = vmax.f32 %v626, 0.0
        %v629 = vadd.f32 %v628, 1e-05
        %v630 = vrsqrt.pop %v629
        %631 = vst [vmem:[#allocation6] sm:$0x1] %v630
      $region44: #{encoder_block.1} parent=31 // pred_fallthru
        _
      // Predicated region
      $region45: #{encoder_block.1} parent=31 // pred_check
        %p632 = pneg %p616
      $region46: #{encoder_block.1} parent=31 // pred_check_branch
        %634 = sbr.rel (%p632) target = $region48
      $region47: #{encoder_block.1} parent=31 // pred_region
        %v635 = vld [vmem:[#allocation5] sm:$0x1]
        %v637 = vlaneseq
        %v638 = vshrl.u32 %v637, 7
        %v639 = vsub.s32 0, %v638
        %v640 = vrot.slane %v635, %v639
        %v642 = vsub.f32 %v479, %v640
        %v643 = vsub.f32 %v482, %v640
        %v644 = vsub.f32 %v487, %v640
        %v645 = vsub.f32 %v490, %v640
        %v646 = vsub.f32 %v495, %v640
        %v647 = vsub.f32 %v498, %v640
        %v648 = vsub.f32 %v503, %v640
        %v649 = vsub.f32 %v506, %v640
        %v650 = vsub.f32 %v511, %v640
        %v651 = vsub.f32 %v514, %v640
        %v652 = vsub.f32 %v519, %v640
        %v653 = vsub.f32 %v522, %v640
        %v654 = vsub.f32 %v527, %v640
        %v655 = vsub.f32 %v530, %v640
        %v656 = vsub.f32 %v535, %v640
        %v657 = vsub.f32 %v538, %v640
        %v658 = vld [vmem:[#allocation6] sm:$0x1]
        %v660 = vlaneseq
        %v661 = vshrl.u32 %v660, 7
        %v662 = vsub.s32 0, %v661
        %v663 = vrot.slane %v658, %v662
        %v665 = vmul.f32 %v642, %v663
        %v666 = vmul.f32 %v643, %v663
        %v667 = vmul.f32 %v644, %v663
        %v668 = vmul.f32 %v645, %v663
        %v669 = vmul.f32 %v646, %v663
        %v670 = vmul.f32 %v647, %v663
        %v671 = vmul.f32 %v648, %v663
        %v672 = vmul.f32 %v649, %v663
        %v673 = vmul.f32 %v650, %v663
        %v674 = vmul.f32 %v651, %v663
        %v675 = vmul.f32 %v652, %v663
        %v676 = vmul.f32 %v653, %v663
        %v677 = vmul.f32 %v654, %v663
        %v678 = vmul.f32 %v655, %v663
        %v679 = vmul.f32 %v656, %v663
        %v680 = vmul.f32 %v657, %v663
        %v681 = vmax.f32 %v665, 0.0
        %v682 = vmax.f32 %v666, 0.0
        %v683 = vmax.f32 %v667, 0.0
        %v684 = vmax.f32 %v668, 0.0
        %v685 = vmax.f32 %v669, 0.0
        %v686 = vmax.f32 %v670, 0.0
        %v687 = vmax.f32 %v671, 0.0
        %v688 = vmax.f32 %v672, 0.0
        %v689 = vmax.f32 %v673, 0.0
        %v690 = vmax.f32 %v674, 0.0
        %v691 = vmax.f32 %v675, 0.0
        %v692 = vmax.f32 %v676, 0.0
        %v693 = vmax.f32 %v677, 0.0
        %v694 = vmax.f32 %v678, 0.0
        %v695 = vmax.f32 %v679, 0.0
        %v696 = vmax.f32 %v680, 0.0
        %697 = vst [vmem:[%s203] sm:$0xff] %v681
        %698 = vst [vmem:[%s203 + $0x8] sm:$0xff] %v682
        %699 = vst [vmem:[%s203 + $0x10] sm:$0xff] %v683
        %700 = vst [vmem:[%s203 + $0x18] sm:$0xff] %v684
        %701 = vst [vmem:[%s203 + $0x20] sm:$0xff] %v685
        %702 = vst [vmem:[%s203 + $0x28] sm:$0xff] %v686
        %703 = vst [vmem:[%s203 + $0x30] sm:$0xff] %v687
        %704 = vst [vmem:[%s203 + $0x38] sm:$0xff] %v688
        %705 = vst [vmem:[%s203 + $0x40] sm:$0xff] %v689
        %706 = vst [vmem:[%s203 + $0x48] sm:$0xff] %v690
        %707 = vst [vmem:[%s203 + $0x50] sm:$0xff] %v691
        %708 = vst [vmem:[%s203 + $0x58] sm:$0xff] %v692
        %709 = vst [vmem:[%s203 + $0x60] sm:$0xff] %v693
        %710 = vst [vmem:[%s203 + $0x68] sm:$0xff] %v694
        %711 = vst [vmem:[%s203 + $0x70] sm:$0xff] %v695
        %712 = vst [vmem:[%s203 + $0x78] sm:$0xff] %v696
      $region48: #{encoder_block.1} parent=31 // pred_fallthru
        _
      %s713 = smul.u32 %s20, %s21
      %s714 = smul.u32 16, %s713
      %p715 = scmp.lt.s32.totalorder %s19, 1
      %s716 = scalar_select %p715, %s19, 1
      %p717 = scmp.lt.s32.totalorder %s714, 15
      %s718 = scalar_select %p717, %s714, 15
      %s719 = smul.addr %s716, 16
      %s720 = sadd.s32 %s718, %s719
      %s721 = smul.addr %s720, 8
      %s722 = scalar_lea.vmem %s3, %s721
      // Predicated region
      $region49: #{encoder_block.1} parent=31 // pred_check
        %p723 = pneg %p123
      $region50: #{encoder_block.1} parent=31 // pred_check_branch
        %725 = sbr.rel (%p723) target = $region52
      $region51: #{encoder_block.1} parent=31 // pred_region
        %s726 = smul.u32 %s20, %s21
        %s727 = smul.u32 16, %s726
      $region52: #{encoder_block.1} parent=31 // pred_fallthru
        _
    $region32: #{encoder_block.1} parent=5 // pred_fallthru
      _
    %p728 = scmp.le.s32.totalorder 2, %s9
    // Predicated region
    $region53: #{encoder_block.1} parent=5 // pred_check
      %p729 = pneg %p728
    $region54: #{encoder_block.1} parent=5 // pred_check_branch
      %731 = sbr.rel (%p729) target = $region56
    $region55: #{encoder_block.1} parent=5 // pred_region
      %s732 = ssub.s32 %s9, 2
      // Predicated region
      $region57: #{encoder_block.1} parent=55 // pred_check
        %p733 = pneg %p129
      $region58: #{encoder_block.1} parent=55 // pred_check_branch
        %735 = sbr.rel (%p733) target = $region60
      $region59: #{encoder_block.1} parent=55 // pred_region
        %s736 = smul.u32 %s23, %s24
        %s737 = smul.u32 16, %s736
        %p738 = scmp.lt.s32.totalorder %s22, 1
        %s739 = scalar_select %p738, %s22, 1
        %p740 = scmp.lt.s32.totalorder %s737, 15
        %s741 = scalar_select %p740, %s737, 15
        %s742 = smul.addr %s739, 16
        %s743 = sadd.s32 %s741, %s742
        %s744 = smul.addr %s743, 8
        %s745 = scalar_lea.vmem %s3, %s744
      $region60: #{encoder_block.1} parent=55 // pred_fallthru
        _
    $region56: #{encoder_block.1} parent=5 // pred_fallthru
      _
  $region6: #{encoder_block.1} parent=0 // loop_footer
    %s13 = sadd.s32 1, %s9
  $region7: #{encoder_block.1} parent=0 // loop_footer_branch
    %8 = sbr.rel target = $region3
  $region8: #{encoder_block.1} parent=0 // loop_exit
    _

</llo_original>
